<compile_context>
chip_gen: v7x
topology: tpu7x:2x2x1
jax: 0.10.0
libtpu: 0.0.40
codegen_flags: <defaults>
</compile_context>

<pallas_src>
import functools

import jax
import jax.numpy as jnp
from jax.experimental import pallas as pl
from jax.experimental.pallas import tpu as pltpu


# -----------------------------------------------------------------------------
# Pallas kernel: one grid step == (batch element, time tile), everything fused.
# -----------------------------------------------------------------------------
def _temporal_block_kernel(x_ref, w1_ref, b1_ref, w2_ref, b2_ref, wd_ref, bd_ref,
                           out_ref, xbuf_ref, h1buf_ref,
                           *, K, dil, pad, tile_t, multi_tile):
    # x_ref    : [1, C_in, tile_t]        bf16 current (unshifted) input tile
    # w1_ref   : [K, C_out, C_in]         bf16 weight-normed conv1 taps
    # w2_ref   : [K, C_out, C_out]        bf16 weight-normed conv2 taps
    # wd_ref   : [C_out, C_in]            bf16 1x1 downsample weight
    # b*_ref   : [C_out, 1]               f32 biases
    # out_ref  : [1, C_out, tile_t]       out_dtype
    # xbuf_ref : [C_in,  pad + tile_t]    bf16 halo buffer (causal carry of x)
    # h1buf_ref: [C_out, pad + tile_t]    bf16 halo buffer (causal carry of h1)
    ti = pl.program_id(1)

    # New batch element -> causal left context is zeros.
    @pl.when(ti == 0)
    def _():
        xbuf_ref[:, :pad] = jnp.zeros((xbuf_ref.shape[0], pad), xbuf_ref.dtype)
        h1buf_ref[:, :pad] = jnp.zeros((h1buf_ref.shape[0], pad), h1buf_ref.dtype)

    x_tile = x_ref[0]                                   # [C_in, tile_t] bf16
    xbuf_ref[:, pad:] = x_tile                          # [carry | current tile]

    # ---- conv1: K small MXU dots fed straight from the halo buffer ----------
    # tap j=K-1 is the unshifted current tile -> read it from x_ref directly.
    acc1 = jnp.dot(w1_ref[K - 1], x_tile, preferred_element_type=jnp.float32)
    for j in range(K - 1):
        acc1 += jnp.dot(w1_ref[j], xbuf_ref[:, j * dil: j * dil + tile_t],
                        preferred_element_type=jnp.float32)
    h1 = jnp.maximum(acc1 + b1_ref[...], 0.0)           # [C_out, tile_t] f32
    # TODO(synk): dropout1/dropout2 are identity (eval mode); no stochastic drop.
    h1_bf = h1.astype(jnp.bfloat16)
    h1buf_ref[:, pad:] = h1_bf

    # ---- conv2: same structure on the h1 halo buffer -------------------------
    acc2 = jnp.dot(w2_ref[K - 1], h1_bf, preferred_element_type=jnp.float32)
    for j in range(K - 1):
        acc2 += jnp.dot(w2_ref[j], h1buf_ref[:, j * dil: j * dil + tile_t],
                        preferred_element_type=jnp.float32)
    h2 = jnp.maximum(acc2 + b2_ref[...], 0.0)           # [C_out, tile_t] f32

    # ---- residual 1x1 conv on the unshifted input tile ------------------------
    res = jnp.dot(wd_ref[...], x_tile,
                  preferred_element_type=jnp.float32) + bd_ref[...]

    # ---- final ReLU(h2 + res), lane-dense store -------------------------------
    out_ref[0] = jnp.maximum(h2 + res, 0.0).astype(out_ref.dtype)

    # Carry the causal tails (last `pad` columns of this tile) to the next tile.
    if multi_tile:
        xbuf_ref[:, :pad] = x_tile[:, tile_t - pad:]
        h1buf_ref[:, :pad] = h1_bf[:, tile_t - pad:]


# -----------------------------------------------------------------------------
# Parameter prep (hoisted: run once for inference, reuse across forward calls).
# -----------------------------------------------------------------------------
def weight_norm_dim1(v, g):
    """torch.nn.utils.weight_norm with dim=1 (as in the original module):
    w = g * v / ||v||, norm over all dims except dim 1.
    v: [C_out, C_in, K], g: [1, C_in, 1]."""
    norm = jnp.sqrt(jnp.sum(v * v, axis=(0, 2), keepdims=True))   # [1, C_in, 1]
    return g * v / norm


def prepare_params(params, *, kernel_size):
    """Fold weight_norm + per-tap layout + bf16 cast once (out of the hot path)."""
    K = kernel_size
    w1 = weight_norm_dim1(params["v1"], params["g1"])             # [C_out, C_in,  K]
    w2 = weight_norm_dim1(params["v2"], params["g2"])             # [C_out, C_out, K]
    C_out = w1.shape[0]
    # W[j] = w[:, :, j]   (tap-major so the kernel indexes the leading axis)
    W1 = jnp.transpose(w1, (2, 0, 1)).astype(jnp.bfloat16)        # [K, C_out, C_in]
    W2 = jnp.transpose(w2, (2, 0, 1)).astype(jnp.bfloat16)        # [K, C_out, C_out]
    Wd = params["wd"][:, :, 0].astype(jnp.bfloat16)               # [C_out, C_in]
    b1 = params["b1"].reshape(C_out, 1).astype(jnp.float32)
    b2 = params["b2"].reshape(C_out, 1).astype(jnp.float32)
    bd = params["bd"].reshape(C_out, 1).astype(jnp.float32)
    return W1, b1, W2, b2, Wd, bd


# -----------------------------------------------------------------------------
# Wrapper: layout plumbing + pallas_call.
# -----------------------------------------------------------------------------
def temporal_block_forward(x_nct, params, *, kernel_size, dilation, padding,
                           out_dtype=jnp.bfloat16, time_tile=None):
    """x_nct: [B, C_in, T] float32 (PyTorch NCT layout). Returns [B, C_out, T]."""
    B, C_in, T = x_nct.shape
    K, dil, pad = kernel_size, dilation, padding
    assert pad == (K - 1) * dil and pad >= 1, "causal TCN padding expected"

    W1, b1, W2, b2, Wd, bd = prepare_params(params, kernel_size=K)
    C_out = W1.shape[1]

    # ---- time tiling: lane-aligned tiles, big enough to amortize per-step cost.
    if time_tile is not None:
        tile_t = time_tile
        assert tile_t >= T or tile_t % 128 == 0, "time_tile must be 128-aligned"
    elif T <= 1024:
        tile_t = T
    else:
        tile_t = max(1024, -(-pad // 128) * 128)
    n_t = -(-T // tile_t)
    T_pad = n_t * tile_t
    multi_tile = n_t > 1
    if multi_tile:
        assert tile_t >= pad, "time tile must cover the receptive-field carry"

    # Cast to bf16 BEFORE padding (halves intermediate HBM bytes). No im2col:
    # conv taps are built in-kernel from the carried halo buffers.
    x_bf = jnp.pad(x_nct.astype(jnp.bfloat16), ((0, 0), (0, 0), (0, T_pad - T)))

    kernel = functools.partial(_temporal_block_kernel, K=K, dil=dil, pad=pad,
                               tile_t=tile_t, multi_tile=multi_tile)

    out_bytes = jnp.dtype(out_dtype).itemsize
    flops = 2 * B * T_pad * (K * C_in * C_out + K * C_out * C_out + C_in * C_out)
    bytes_accessed = (x_bf.size * 2 + B * C_out * T_pad * out_bytes
                      + (W1.size + W2.size + Wd.size) * 2
                      + (b1.size + b2.size + bd.size) * 4)

    # VMEM budget: double-buffered x/out blocks + (double-buffered) weights +
    # the two halo scratches.  Raise the scoped limit (v5e default is 16 MiB)
    # but stay within v7x's 64 MiB physical VMEM.
    blk_bytes = (2 * C_in * tile_t * 2
                 + 2 * C_out * tile_t * out_bytes
                 + 2 * (W1.size + W2.size + Wd.size) * 2
                 + 2 * (b1.size + b2.size + bd.size) * 4
                 + (C_in + C_out) * (pad + tile_t) * 2)
    vmem_limit = int(min(64 * 2**20, max(32 * 2**20, 4 * blk_bytes)))

    out = pl.pallas_call(
        kernel,
        out_shape=jax.ShapeDtypeStruct((B, C_out, T_pad), out_dtype),
        grid_spec=pltpu.PrefetchScalarGridSpec(
            num_scalar_prefetch=0,
            grid=(B, n_t),
            in_specs=[
                pl.BlockSpec((1, C_in, tile_t), lambda b, t: (b, 0, t)),
                pl.BlockSpec((K, C_out, C_in), lambda b, t: (0, 0, 0)),
                pl.BlockSpec((C_out, 1), lambda b, t: (0, 0)),
                pl.BlockSpec((K, C_out, C_out), lambda b, t: (0, 0, 0)),
                pl.BlockSpec((C_out, 1), lambda b, t: (0, 0)),
                pl.BlockSpec((C_out, C_in), lambda b, t: (0, 0)),
                pl.BlockSpec((C_out, 1), lambda b, t: (0, 0)),
            ],
            out_specs=pl.BlockSpec((1, C_out, tile_t), lambda b, t: (b, 0, t)),
            scratch_shapes=[
                pltpu.VMEM((C_in, pad + tile_t), jnp.bfloat16),    # x halo/carry
                pltpu.VMEM((C_out, pad + tile_t), jnp.bfloat16),   # h1 halo/carry
            ],
        ),
        compiler_params=pltpu.CompilerParams(
            # batch is parallel (megacore); time is sequential (causal carry).
            dimension_semantics=("parallel", "arbitrary"),
            vmem_limit_bytes=vmem_limit),
        cost_estimate=pl.CostEstimate(flops=int(flops), transcendentals=0,
                                      bytes_accessed=int(bytes_accessed)),
    )(x_bf, W1, b1, W2, b2, Wd, bd)

    return out if T_pad == T else out[:, :, :T]


# -----------------------------------------------------------------------------
# Pure-JAX reference (f32, no Pallas) for a correctness sanity check.
# -----------------------------------------------------------------------------
def reference_forward(x_nct, params, *, kernel_size, dilation, padding):
    K, dil, pad = kernel_size, dilation, padding
    B, C_in, T = x_nct.shape
    w1 = weight_norm_dim1(params["v1"], params["g1"])
    w2 = weight_norm_dim1(params["v2"], params["g2"])
    wd = params["wd"][:, :, 0]

    def causal_conv(h, w, b):
        hp = jnp.pad(h, ((0, 0), (0, 0), (pad, 0)))
        acc = jnp.zeros((B, w.shape[0], T), jnp.float32)
        for j in range(K):
            acc += jnp.einsum("oc,bct->bot", w[:, :, j], hp[:, :, j * dil: j * dil + T])
        return acc + b.reshape(1, -1, 1)

    h1 = jax.nn.relu(causal_conv(x_nct, w1, params["b1"]))
    h2 = jax.nn.relu(causal_conv(h1, w2, params["b2"]))
    res = jnp.einsum("oc,bct->bot", wd, x_nct) + params["bd"].reshape(1, -1, 1)
    return jax.nn.relu(h2 + res)


if __name__ == "__main__":
    # Module hyper-parameters (stride must be 1 for the chomp trick).
    n_inputs, n_outputs = 4, 8
    kernel_size, dilation = 3, 2
    padding = (kernel_size - 1) * dilation

    key = jax.random.PRNGKey(0)
    keys = jax.random.split(key, 8)

    # Deterministic parameter init mirroring TemporalBlock.init_weights():
    # conv weights ~ N(0, 0.01); weight_norm g initialized to ||v|| (PyTorch init).
    v1 = 0.01 * jax.random.normal(keys[0], (n_outputs, n_inputs, kernel_size), jnp.float32)
    v2 = 0.01 * jax.random.normal(keys[2], (n_outputs, n_outputs, kernel_size), jnp.float32)
    params = {
        "v1": v1,
        "g1": jnp.sqrt(jnp.sum(v1 * v1, axis=(0, 2), keepdims=True)),
        "b1": 0.1 * jax.random.uniform(keys[1], (n_outputs,), jnp.float32, -1.0, 1.0),
        "v2": v2,
        "g2": jnp.sqrt(jnp.sum(v2 * v2, axis=(0, 2), keepdims=True)),
        "b2": 0.1 * jax.random.uniform(keys[3], (n_outputs,), jnp.float32, -1.0, 1.0),
        "wd": 0.01 * jax.random.normal(keys[4], (n_outputs, n_inputs, 1), jnp.float32),
        "bd": 0.1 * jax.random.uniform(keys[5], (n_outputs,), jnp.float32, -1.0, 1.0),
    }

    # ---- Test 1: small shape, single time tile --------------------------------
    B, T = 2, 16
    x = jax.random.normal(keys[6], (B, n_inputs, T), jnp.float32)   # [B, D, T]
    y = temporal_block_forward(x, params, kernel_size=kernel_size,
                               dilation=dilation, padding=padding)
    y = jax.block_until_ready(y)
    y_ref = reference_forward(x, params, kernel_size=kernel_size,
                              dilation=dilation, padding=padding)
    assert y.shape == (B, n_outputs, T)
    # bf16 MXU operands + bf16 output -> relaxed tolerance vs. f32 reference.
    assert jnp.allclose(y.astype(jnp.float32), y_ref, atol=1e-2, rtol=1e-2)

    # ---- Test 2: multi-tile causal-carry path (forced 128-wide time tiles) ----
    T2 = 256
    x2 = jax.random.normal(keys[7], (B, n_inputs, T2), jnp.float32)
    y2 = temporal_block_forward(x2, params, kernel_size=kernel_size,
                                dilation=dilation, padding=padding, time_tile=128)
    y2 = jax.block_until_ready(y2)
    y2_ref = reference_forward(x2, params, kernel_size=kernel_size,
                               dilation=dilation, padding=padding)
    assert y2.shape == (B, n_outputs, T2)
    assert jnp.allclose(y2.astype(jnp.float32), y2_ref, atol=1e-2, rtol=1e-2)

    print("KERNEL_OK")
</pallas_src>

<mosaic_0001>
module attributes {stable_mosaic.version = 11 : i64} {
  func.func @_temporal_block_kernel(%arg0: i32, %arg1: i32, %arg2: memref<1x4x16xbf16, #tpu.memory_space<vmem>>, %arg3: memref<3x8x4xbf16, #tpu.memory_space<vmem>>, %arg4: memref<8x1xf32, #tpu.memory_space<vmem>>, %arg5: memref<3x8x8xbf16, #tpu.memory_space<vmem>>, %arg6: memref<8x1xf32, #tpu.memory_space<vmem>>, %arg7: memref<8x4xbf16, #tpu.memory_space<vmem>>, %arg8: memref<8x1xf32, #tpu.memory_space<vmem>>, %arg9: memref<1x8x16xbf16, #tpu.memory_space<vmem>>, %arg10: memref<4x20xbf16, #tpu.memory_space<vmem>>, %arg11: memref<8x20xbf16, #tpu.memory_space<vmem>>) attributes {dimension_semantics = [#tpu.dimension_semantics<parallel>, #tpu.dimension_semantics<arbitrary>], iteration_bounds = array<i64: 2, 1>, scalar_prefetch = 0 : i64, scratch_operands = 2 : i64, tpu.core_type = #tpu.core_type<tc>, window_params = [{transform_indices = @transform_0, window_bounds = array<i64: 1, 4, 16>}, {pipeline_mode = #tpu.pipeline_mode<synchronous>, transform_indices = @transform_1, window_bounds = array<i64: 3, 8, 4>}, {pipeline_mode = #tpu.pipeline_mode<synchronous>, transform_indices = @transform_2, window_bounds = array<i64: 8, 1>}, {pipeline_mode = #tpu.pipeline_mode<synchronous>, transform_indices = @transform_3, window_bounds = array<i64: 3, 8, 8>}, {pipeline_mode = #tpu.pipeline_mode<synchronous>, transform_indices = @transform_4, window_bounds = array<i64: 8, 1>}, {pipeline_mode = #tpu.pipeline_mode<synchronous>, transform_indices = @transform_5, window_bounds = array<i64: 8, 4>}, {pipeline_mode = #tpu.pipeline_mode<synchronous>, transform_indices = @transform_6, window_bounds = array<i64: 8, 1>}, {transform_indices = @transform_7, window_bounds = array<i64: 1, 8, 16>}]} {
    %c0_i32 = arith.constant 0 : i32
    %0 = arith.cmpi eq, %arg1, %c0_i32 : i32
    %1 = arith.extui %0 : i1 to i32
    %c0_i32_0 = arith.constant 0 : i32
    %2 = arith.cmpi ne, %1, %c0_i32_0 : i32
    scf.if %2 {
      %cst_50 = arith.constant 0.000000e+00 : bf16
      %56 = vector.broadcast %cst_50 : bf16 to vector<4x4xbf16>
      %c0_51 = arith.constant 0 : index
      %c0_52 = arith.constant 0 : index
      %57 = vector.load %arg10[%c0_51, %c0_52] : memref<4x20xbf16, #tpu.memory_space<vmem>>, vector<4x4xbf16>
      tpu.vector_store %arg10[%c0_51, %c0_52], %56 {strides = array<i32>} : memref<4x20xbf16, #tpu.memory_space<vmem>>, vector<4x4xbf16>,
      %cst_53 = arith.constant 0.000000e+00 : bf16
      %58 = vector.broadcast %cst_53 : bf16 to vector<8x4xbf16>
      %c0_54 = arith.constant 0 : index
      %c0_55 = arith.constant 0 : index
      %59 = vector.load %arg11[%c0_54, %c0_55] : memref<8x20xbf16, #tpu.memory_space<vmem>>, vector<8x4xbf16>
      tpu.vector_store %arg11[%c0_54, %c0_55], %58 {strides = array<i32>} : memref<8x20xbf16, #tpu.memory_space<vmem>>, vector<8x4xbf16>,
    } else {
    }
    %c0 = arith.constant 0 : index
    %c0_1 = arith.constant 0 : index
    %c0_2 = arith.constant 0 : index
    %3 = vector.load %arg2[%c0, %c0_1, %c0_2] : memref<1x4x16xbf16, #tpu.memory_space<vmem>>, vector<1x4x16xbf16>
    %4 = vector.shape_cast %3 : vector<1x4x16xbf16> to vector<4x16xbf16>
    %c0_3 = arith.constant 0 : index
    %c4 = arith.constant 4 : index
    %5 = vector.load %arg10[%c0_3, %c4] : memref<4x20xbf16, #tpu.memory_space<vmem>>, vector<4x16xbf16>
    tpu.vector_store %arg10[%c0_3, %c4], %4 {strides = array<i32>} : memref<4x20xbf16, #tpu.memory_space<vmem>>, vector<4x16xbf16>,
    %c2 = arith.constant 2 : index
    %c0_4 = arith.constant 0 : index
    %c0_5 = arith.constant 0 : index
    %6 = vector.load %arg3[%c2, %c0_4, %c0_5] : memref<3x8x4xbf16, #tpu.memory_space<vmem>>, vector<1x8x4xbf16>
    %7 = vector.shape_cast %6 : vector<1x8x4xbf16> to vector<8x4xbf16>
    %cst = arith.constant dense<0.000000e+00> : vector<8x16xf32>
    %8 = tpu.matmul %7, %4, %cst {dimension_numbers = #tpu.dot_dimension_numbers<[1], [0], [0], [1], [0, 0, 1, 1], [], []>} : vector<8x4xbf16>, vector<4x16xbf16>, vector<8x16xf32> -> vector<8x16xf32>
    %c0_6 = arith.constant 0 : index
    %c0_7 = arith.constant 0 : index
    %c0_8 = arith.constant 0 : index
    %9 = vector.load %arg3[%c0_6, %c0_7, %c0_8] : memref<3x8x4xbf16, #tpu.memory_space<vmem>>, vector<1x8x4xbf16>
    %10 = vector.shape_cast %9 : vector<1x8x4xbf16> to vector<8x4xbf16>
    %c0_9 = arith.constant 0 : index
    %c0_10 = arith.constant 0 : index
    %11 = vector.load %arg10[%c0_9, %c0_10] : memref<4x20xbf16, #tpu.memory_space<vmem>>, vector<4x16xbf16>
    %cst_11 = arith.constant dense<0.000000e+00> : vector<8x16xf32>
    %12 = tpu.matmul %10, %11, %cst_11 {dimension_numbers = #tpu.dot_dimension_numbers<[1], [0], [0], [1], [0, 0, 1, 1], [], []>} : vector<8x4xbf16>, vector<4x16xbf16>, vector<8x16xf32> -> vector<8x16xf32>
    %13 = arith.addf %8, %12 : vector<8x16xf32>
    %c1 = arith.constant 1 : index
    %c0_12 = arith.constant 0 : index
    %c0_13 = arith.constant 0 : index
    %14 = vector.load %arg3[%c1, %c0_12, %c0_13] : memref<3x8x4xbf16, #tpu.memory_space<vmem>>, vector<1x8x4xbf16>
    %15 = vector.shape_cast %14 : vector<1x8x4xbf16> to vector<8x4xbf16>
    %c0_14 = arith.constant 0 : index
    %c2_15 = arith.constant 2 : index
    %16 = vector.load %arg10[%c0_14, %c2_15] : memref<4x20xbf16, #tpu.memory_space<vmem>>, vector<4x16xbf16>
    %cst_16 = arith.constant dense<0.000000e+00> : vector<8x16xf32>
    %17 = tpu.matmul %15, %16, %cst_16 {dimension_numbers = #tpu.dot_dimension_numbers<[1], [0], [0], [1], [0, 0, 1, 1], [], []>} : vector<8x4xbf16>, vector<4x16xbf16>, vector<8x16xf32> -> vector<8x16xf32>
    %18 = arith.addf %13, %17 : vector<8x16xf32>
    %c0_17 = arith.constant 0 : index
    %c0_18 = arith.constant 0 : index
    %19 = vector.load %arg4[%c0_17, %c0_18] : memref<8x1xf32, #tpu.memory_space<vmem>>, vector<8x1xf32>
    %20 = vector.broadcast %19 : vector<8x1xf32> to vector<8x16xf32>
    %21 = arith.addf %18, %20 : vector<8x16xf32>
    %cst_19 = arith.constant 0.000000e+00 : f32
    %22 = vector.broadcast %cst_19 : f32 to vector<8x16xf32>
    %23 = arith.maximumf %21, %22 : vector<8x16xf32>
    %24 = arith.truncf %23 : vector<8x16xf32> to vector<8x16xbf16>
    %c0_20 = arith.constant 0 : index
    %c4_21 = arith.constant 4 : index
    %25 = vector.load %arg11[%c0_20, %c4_21] : memref<8x20xbf16, #tpu.memory_space<vmem>>, vector<8x16xbf16>
    tpu.vector_store %arg11[%c0_20, %c4_21], %24 {strides = array<i32>} : memref<8x20xbf16, #tpu.memory_space<vmem>>, vector<8x16xbf16>,
    %c2_22 = arith.constant 2 : index
    %c0_23 = arith.constant 0 : index
    %c0_24 = arith.constant 0 : index
    %26 = vector.load %arg5[%c2_22, %c0_23, %c0_24] : memref<3x8x8xbf16, #tpu.memory_space<vmem>>, vector<1x8x8xbf16>
    %27 = vector.shape_cast %26 : vector<1x8x8xbf16> to vector<8x8xbf16>
    %cst_25 = arith.constant dense<0.000000e+00> : vector<8x16xf32>
    %28 = tpu.matmul %27, %24, %cst_25 {dimension_numbers = #tpu.dot_dimension_numbers<[1], [0], [0], [1], [0, 0, 1, 1], [], []>} : vector<8x8xbf16>, vector<8x16xbf16>, vector<8x16xf32> -> vector<8x16xf32>
    %c0_26 = arith.constant 0 : index
    %c0_27 = arith.constant 0 : index
    %c0_28 = arith.constant 0 : index
    %29 = vector.load %arg5[%c0_26, %c0_27, %c0_28] : memref<3x8x8xbf16, #tpu.memory_space<vmem>>, vector<1x8x8xbf16>
    %30 = vector.shape_cast %29 : vector<1x8x8xbf16> to vector<8x8xbf16>
    %c0_29 = arith.constant 0 : index
    %c0_30 = arith.constant 0 : index
    %31 = vector.load %arg11[%c0_29, %c0_30] : memref<8x20xbf16, #tpu.memory_space<vmem>>, vector<8x16xbf16>
    %cst_31 = arith.constant dense<0.000000e+00> : vector<8x16xf32>
    %32 = tpu.matmul %30, %31, %cst_31 {dimension_numbers = #tpu.dot_dimension_numbers<[1], [0], [0], [1], [0, 0, 1, 1], [], []>} : vector<8x8xbf16>, vector<8x16xbf16>, vector<8x16xf32> -> vector<8x16xf32>
    %33 = arith.addf %28, %32 : vector<8x16xf32>
    %c1_32 = arith.constant 1 : index
    %c0_33 = arith.constant 0 : index
    %c0_34 = arith.constant 0 : index
    %34 = vector.load %arg5[%c1_32, %c0_33, %c0_34] : memref<3x8x8xbf16, #tpu.memory_space<vmem>>, vector<1x8x8xbf16>
    %35 = vector.shape_cast %34 : vector<1x8x8xbf16> to vector<8x8xbf16>
    %c0_35 = arith.constant 0 : index
    %c2_36 = arith.constant 2 : index
    %36 = vector.load %arg11[%c0_35, %c2_36] : memref<8x20xbf16, #tpu.memory_space<vmem>>, vector<8x16xbf16>
    %cst_37 = arith.constant dense<0.000000e+00> : vector<8x16xf32>
    %37 = tpu.matmul %35, %36, %cst_37 {dimension_numbers = #tpu.dot_dimension_numbers<[1], [0], [0], [1], [0, 0, 1, 1], [], []>} : vector<8x8xbf16>, vector<8x16xbf16>, vector<8x16xf32> -> vector<8x16xf32>
    %38 = arith.addf %33, %37 : vector<8x16xf32>
    %c0_38 = arith.constant 0 : index
    %c0_39 = arith.constant 0 : index
    %39 = vector.load %arg6[%c0_38, %c0_39] : memref<8x1xf32, #tpu.memory_space<vmem>>, vector<8x1xf32>
    %40 = vector.broadcast %39 : vector<8x1xf32> to vector<8x16xf32>
    %41 = arith.addf %38, %40 : vector<8x16xf32>
    %cst_40 = arith.constant 0.000000e+00 : f32
    %42 = vector.broadcast %cst_40 : f32 to vector<8x16xf32>
    %43 = arith.maximumf %41, %42 : vector<8x16xf32>
    %c0_41 = arith.constant 0 : index
    %c0_42 = arith.constant 0 : index
    %44 = vector.load %arg7[%c0_41, %c0_42] : memref<8x4xbf16, #tpu.memory_space<vmem>>, vector<8x4xbf16>
    %cst_43 = arith.constant dense<0.000000e+00> : vector<8x16xf32>
    %45 = tpu.matmul %44, %4, %cst_43 {dimension_numbers = #tpu.dot_dimension_numbers<[1], [0], [0], [1], [0, 0, 1, 1], [], []>} : vector<8x4xbf16>, vector<4x16xbf16>, vector<8x16xf32> -> vector<8x16xf32>
    %c0_44 = arith.constant 0 : index
    %c0_45 = arith.constant 0 : index
    %46 = vector.load %arg8[%c0_44, %c0_45] : memref<8x1xf32, #tpu.memory_space<vmem>>, vector<8x1xf32>
    %47 = vector.broadcast %46 : vector<8x1xf32> to vector<8x16xf32>
    %48 = arith.addf %45, %47 : vector<8x16xf32>
    %49 = arith.addf %43, %48 : vector<8x16xf32>
    %cst_46 = arith.constant 0.000000e+00 : f32
    %50 = vector.broadcast %cst_46 : f32 to vector<8x16xf32>
    %51 = arith.maximumf %49, %50 : vector<8x16xf32>
    %52 = arith.truncf %51 : vector<8x16xf32> to vector<8x16xbf16>
    %c0_47 = arith.constant 0 : index
    %c0_48 = arith.constant 0 : index
    %c0_49 = arith.constant 0 : index
    %53 = vector.load %arg9[%c0_47, %c0_48, %c0_49] : memref<1x8x16xbf16, #tpu.memory_space<vmem>>, vector<1x8x16xbf16>
    %54 = vector.shape_cast %53 : vector<1x8x16xbf16> to vector<8x16xbf16>
    %55 = vector.shape_cast %52 : vector<8x16xbf16> to vector<1x8x16xbf16>
    tpu.vector_store %arg9[%c0_47, %c0_48, %c0_49], %55 {strides = array<i32>} : memref<1x8x16xbf16, #tpu.memory_space<vmem>>, vector<1x8x16xbf16>,
    return
  }
  func.func @transform_0(%arg0: i32, %arg1: i32) -> (i32, i32, i32) {
    %c0_i32 = arith.constant 0 : i32
    %c0_i32_0 = arith.constant 0 : i32
    return %arg0, %c0_i32, %arg1 : i32, i32, i32
  }
  func.func @transform_1(%arg0: i32, %arg1: i32) -> (i32, i32, i32) {
    %c0_i32 = arith.constant 0 : i32
    %c0_i32_0 = arith.constant 0 : i32
    %c0_i32_1 = arith.constant 0 : i32
    %c0_i32_2 = arith.constant 0 : i32
    return %c0_i32, %c0_i32_0, %c0_i32_1 : i32, i32, i32
  }
  func.func @transform_2(%arg0: i32, %arg1: i32) -> (i32, i32) {
    %c0_i32 = arith.constant 0 : i32
    %c0_i32_0 = arith.constant 0 : i32
    %c0_i32_1 = arith.constant 0 : i32
    return %c0_i32, %c0_i32_0 : i32, i32
  }
  func.func @transform_3(%arg0: i32, %arg1: i32) -> (i32, i32, i32) {
    %c0_i32 = arith.constant 0 : i32
    %c0_i32_0 = arith.constant 0 : i32
    %c0_i32_1 = arith.constant 0 : i32
    %c0_i32_2 = arith.constant 0 : i32
    return %c0_i32, %c0_i32_0, %c0_i32_1 : i32, i32, i32
  }
  func.func @transform_4(%arg0: i32, %arg1: i32) -> (i32, i32) {
    %c0_i32 = arith.constant 0 : i32
    %c0_i32_0 = arith.constant 0 : i32
    %c0_i32_1 = arith.constant 0 : i32
    return %c0_i32, %c0_i32_0 : i32, i32
  }
  func.func @transform_5(%arg0: i32, %arg1: i32) -> (i32, i32) {
    %c0_i32 = arith.constant 0 : i32
    %c0_i32_0 = arith.constant 0 : i32
    %c0_i32_1 = arith.constant 0 : i32
    return %c0_i32, %c0_i32_0 : i32, i32
  }
  func.func @transform_6(%arg0: i32, %arg1: i32) -> (i32, i32) {
    %c0_i32 = arith.constant 0 : i32
    %c0_i32_0 = arith.constant 0 : i32
    %c0_i32_1 = arith.constant 0 : i32
    return %c0_i32, %c0_i32_0 : i32, i32
  }
  func.func @transform_7(%arg0: i32, %arg1: i32) -> (i32, i32, i32) {
    %c0_i32 = arith.constant 0 : i32
    %c0_i32_0 = arith.constant 0 : i32
    return %arg0, %c0_i32, %arg1 : i32, i32, i32
  }
}

</mosaic_0001>

<llo_original>
// kernel: tpu_custom_call.1
$region0: #{tpu_custom_call.1}
  #allocation0 [shape = 'u32[]', space=smem, size = 0x4, offset = 0x4, fixed_abs, tag = 'smem constant byte address 0x4 - core index']
  #allocation1 [shape = 'u32[144,128]{1,0:T(1,128)}', space=vmem, size = 0x12000, scoped, tag = 'internal scratch']
  #allocation2 [shape = 'bf16[4,20]{1,0:T(4,128)(2,1)}', space=vmem, size = 0x400, scoped, tag = 'scratch operand']
  #allocation3 [shape = 'bf16[8,20]{1,0:T(8,128)(2,1)}', space=vmem, size = 0x800, scoped, tag = 'scratch operand']
  %s0 = inlined_call_operand.vmem [shape: bf16[2,4,16], index: 0, kind: input, shape index: {}]
  %s1 = inlined_call_operand.vmem [shape: bf16[3,8,4], index: 1, kind: input, shape index: {}]
  %s2 = inlined_call_operand.vmem [shape: f32[8,1], index: 2, kind: input, shape index: {}]
  %s3 = inlined_call_operand.vmem [shape: bf16[3,8,8], index: 3, kind: input, shape index: {}]
  %s4 = inlined_call_operand.vmem [shape: f32[8,1], index: 4, kind: input, shape index: {}]
  %s5 = inlined_call_operand.vmem [shape: bf16[8,4], index: 5, kind: input, shape index: {}]
  %s6 = inlined_call_operand.vmem [shape: f32[8,1], index: 6, kind: input, shape index: {}]
  %s7 = inlined_call_operand.hbm [shape: bf16[2,8,16], index: 7, kind: output, shape index: {}]
  %s8 = sld [smem:[#allocation0]]
  $region65: #{tpu_custom_call.1} parent=0
    _
  %s10 = ssub.s32 1, %s8
  %s11 = scalar_select 0, %s10, %s8
  $region1: #{tpu_custom_call.1} parent=0
    #allocation4 [shape = 'u8[4096]{0}', space=vmem, size = 0x1000, scoped, tag = 'output window, operand 0']
    #allocation5 [shape = 's32[2]{0}', space=sflag, size = 0x8, scoped, tag = 'scoped memory for tpu_custom_call.1']
    %12 = vsyncpa [#allocation5], 0
    %s13 = scalar_lea.sflag [#allocation5], 1
    %14 = vsyncpa %s13, 0
    loop: start=0, step=1, limit=4
    $region2: #{tpu_custom_call.1} parent=1 // loop_pre_header
      _
    $region3: #{tpu_custom_call.1} parent=1 // loop_header
      %s16 = sphi 0, %s20
      %p17 = scmp.ge.s32.totalorder %s16, 4
      %s23 = sphi 0, %s35
      %s24 = sphi 0, %s31
      %s25 = sphi 0, %s23
      %s26 = sphi 0, %s24
      %s27 = sphi 0, %s25
      %s28 = sphi 0, %s26
      %s40 = sphi 0, %s42
      %s43 = sphi 0, %s40
      %s44 = sphi 0, %s43
      %s60 = sphi 0, %s44
      %s64 = sphi 0, %s64
      %s66 = sphi 0, %s64
      %s67 = sphi 0, %s66
      %s81 = sphi 0, %s67
      %s85 = sphi 0, %s85
      %s87 = sphi 0, %s85
      %s88 = sphi 0, %s87
      %s102 = sphi 0, %s88
      %s106 = sphi 0, %s106
      %s108 = sphi 0, %s106
      %s109 = sphi 0, %s108
      %s123 = sphi 0, %s109
      %s127 = sphi 0, %s127
      %s129 = sphi 0, %s127
      %s130 = sphi 0, %s129
      %s144 = sphi 0, %s130
      %s148 = sphi 0, %s148
      %s150 = sphi 0, %s148
      %s151 = sphi 0, %s150
      %s165 = sphi 0, %s151
      %s169 = sphi 0, %s169
      %s171 = sphi 0, %s169
      %s172 = sphi 0, %s171
      %s186 = sphi 0, %s172
      %s194 = sphi 0, %s196
      %s197 = sphi 0, %s194
      %s198 = sphi 0, %s197
      %s214 = sphi 0, %s198
    $region4: #{tpu_custom_call.1} parent=1 // loop_header_branch
      %19 = sbr.rel (%p17) target = $region8
    $region5: #{tpu_custom_call.1} parent=1 // loop_body
      %s21 = ssub.s32 %s16, 1
      %s22 = ssub.s32 %s16, 2
      %s29 = sadd.s32 1, %s24
      %p30 = scmp.ge.s32.totalorder %s29, 1
      %s31 = scalar_select %p30, 0, %s29
      %s32 = sadd.s32 1, %s23
      %s33 = scalar_select %p30, %s32, %s23
      %p34 = scmp.ge.s32.totalorder %s33, 2
      %s35 = scalar_select %p34, 0, %s33
      %s36 = ssub.s32 %s23, %s35
      %s37 = ssub.s32 %s24, %s31
      %s38 = sor.u32 %s36, %s37
      %p39 = scmp.eq.s32.totalorder %s38, 0
      %s41 = sadd.s32 %s40, 1
      %s42 = scalar_select %p39, %s40, %s41
      %p45 = pneg %p39
      %p46 = scmp.eq.s32.totalorder %s16, 1
      %p47 = por %p45, %p46
      %p48 = scmp.ne.s32.totalorder %s40, %s43
      %p49 = scmp.eq.s32.totalorder %s16, 0
      %p50 = por %p48, %p49
      %p51 = scmp.ne.s32.totalorder %s40, %s43
      %p52 = scmp.eq.s32.totalorder %s21, 1
      %p53 = por %p51, %p52
      %p54 = scmp.ne.s32.totalorder %s43, %s44
      %p55 = scmp.eq.s32.totalorder %s21, 0
      %p56 = por %p54, %p55
      %p57 = scmp.ne.s32.totalorder %s43, %s44
      %p58 = scmp.eq.s32.totalorder %s22, 1
      %p59 = por %p57, %p58
      %p61 = scmp.ne.s32.totalorder %s44, %s60
      %p62 = scmp.eq.s32.totalorder %s22, 0
      %p63 = por %p61, %p62
      %s65 = sadd.s32 %s64, 1
      %p68 = scmp.eq.s32.totalorder %s16, 1
      %p69 = scmp.ne.s32.totalorder %s64, %s66
      %p70 = scmp.eq.s32.totalorder %s16, 0
      %p71 = por %p69, %p70
      %p72 = scmp.ne.s32.totalorder %s64, %s66
      %p73 = scmp.eq.s32.totalorder %s21, 1
      %p74 = por %p72, %p73
      %p75 = scmp.ne.s32.totalorder %s66, %s67
      %p76 = scmp.eq.s32.totalorder %s21, 0
      %p77 = por %p75, %p76
      %p78 = scmp.ne.s32.totalorder %s66, %s67
      %p79 = scmp.eq.s32.totalorder %s22, 1
      %p80 = por %p78, %p79
      %p82 = scmp.ne.s32.totalorder %s67, %s81
      %p83 = scmp.eq.s32.totalorder %s22, 0
      %p84 = por %p82, %p83
      %s86 = sadd.s32 %s85, 1
      %p89 = scmp.eq.s32.totalorder %s16, 1
      %p90 = scmp.ne.s32.totalorder %s85, %s87
      %p91 = scmp.eq.s32.totalorder %s16, 0
      %p92 = por %p90, %p91
      %p93 = scmp.ne.s32.totalorder %s85, %s87
      %p94 = scmp.eq.s32.totalorder %s21, 1
      %p95 = por %p93, %p94
      %p96 = scmp.ne.s32.totalorder %s87, %s88
      %p97 = scmp.eq.s32.totalorder %s21, 0
      %p98 = por %p96, %p97
      %p99 = scmp.ne.s32.totalorder %s87, %s88
      %p100 = scmp.eq.s32.totalorder %s22, 1
      %p101 = por %p99, %p100
      %p103 = scmp.ne.s32.totalorder %s88, %s102
      %p104 = scmp.eq.s32.totalorder %s22, 0
      %p105 = por %p103, %p104
      %s107 = sadd.s32 %s106, 1
      %p110 = scmp.eq.s32.totalorder %s16, 1
      %p111 = scmp.ne.s32.totalorder %s106, %s108
      %p112 = scmp.eq.s32.totalorder %s16, 0
      %p113 = por %p111, %p112
      %p114 = scmp.ne.s32.totalorder %s106, %s108
      %p115 = scmp.eq.s32.totalorder %s21, 1
      %p116 = por %p114, %p115
      %p117 = scmp.ne.s32.totalorder %s108, %s109
      %p118 = scmp.eq.s32.totalorder %s21, 0
      %p119 = por %p117, %p118
      %p120 = scmp.ne.s32.totalorder %s108, %s109
      %p121 = scmp.eq.s32.totalorder %s22, 1
      %p122 = por %p120, %p121
      %p124 = scmp.ne.s32.totalorder %s109, %s123
      %p125 = scmp.eq.s32.totalorder %s22, 0
      %p126 = por %p124, %p125
      %s128 = sadd.s32 %s127, 1
      %p131 = scmp.eq.s32.totalorder %s16, 1
      %p132 = scmp.ne.s32.totalorder %s127, %s129
      %p133 = scmp.eq.s32.totalorder %s16, 0
      %p134 = por %p132, %p133
      %p135 = scmp.ne.s32.totalorder %s127, %s129
      %p136 = scmp.eq.s32.totalorder %s21, 1
      %p137 = por %p135, %p136
      %p138 = scmp.ne.s32.totalorder %s129, %s130
      %p139 = scmp.eq.s32.totalorder %s21, 0
      %p140 = por %p138, %p139
      %p141 = scmp.ne.s32.totalorder %s129, %s130
      %p142 = scmp.eq.s32.totalorder %s22, 1
      %p143 = por %p141, %p142
      %p145 = scmp.ne.s32.totalorder %s130, %s144
      %p146 = scmp.eq.s32.totalorder %s22, 0
      %p147 = por %p145, %p146
      %s149 = sadd.s32 %s148, 1
      %p152 = scmp.eq.s32.totalorder %s16, 1
      %p153 = scmp.ne.s32.totalorder %s148, %s150
      %p154 = scmp.eq.s32.totalorder %s16, 0
      %p155 = por %p153, %p154
      %p156 = scmp.ne.s32.totalorder %s148, %s150
      %p157 = scmp.eq.s32.totalorder %s21, 1
      %p158 = por %p156, %p157
      %p159 = scmp.ne.s32.totalorder %s150, %s151
      %p160 = scmp.eq.s32.totalorder %s21, 0
      %p161 = por %p159, %p160
      %p162 = scmp.ne.s32.totalorder %s150, %s151
      %p163 = scmp.eq.s32.totalorder %s22, 1
      %p164 = por %p162, %p163
      %p166 = scmp.ne.s32.totalorder %s151, %s165
      %p167 = scmp.eq.s32.totalorder %s22, 0
      %p168 = por %p166, %p167
      %s170 = sadd.s32 %s169, 1
      %p173 = scmp.eq.s32.totalorder %s16, 1
      %p174 = scmp.ne.s32.totalorder %s169, %s171
      %p175 = scmp.eq.s32.totalorder %s16, 0
      %p176 = por %p174, %p175
      %p177 = scmp.ne.s32.totalorder %s169, %s171
      %p178 = scmp.eq.s32.totalorder %s21, 1
      %p179 = por %p177, %p178
      %p180 = scmp.ne.s32.totalorder %s171, %s172
      %p181 = scmp.eq.s32.totalorder %s21, 0
      %p182 = por %p180, %p181
      %p183 = scmp.ne.s32.totalorder %s171, %s172
      %p184 = scmp.eq.s32.totalorder %s22, 1
      %p185 = por %p183, %p184
      %p187 = scmp.ne.s32.totalorder %s172, %s186
      %p188 = scmp.eq.s32.totalorder %s22, 0
      %p189 = por %p187, %p188
      %s190 = ssub.s32 %s23, %s35
      %s191 = ssub.s32 %s24, %s31
      %s192 = sor.u32 %s190, %s191
      %p193 = scmp.eq.s32.totalorder %s192, 0
      %s195 = sadd.s32 %s194, 1
      %s196 = scalar_select %p193, %s194, %s195
      %p199 = pneg %p193
      %p200 = scmp.eq.s32.totalorder %s16, 1
      %p201 = por %p199, %p200
      %p202 = scmp.ne.s32.totalorder %s194, %s197
      %p203 = scmp.eq.s32.totalorder %s16, 0
      %p204 = por %p202, %p203
      %p205 = scmp.ne.s32.totalorder %s194, %s197
      %p206 = scmp.eq.s32.totalorder %s21, 1
      %p207 = por %p205, %p206
      %p208 = scmp.ne.s32.totalorder %s197, %s198
      %p209 = scmp.eq.s32.totalorder %s21, 0
      %p210 = por %p208, %p209
      %p211 = scmp.ne.s32.totalorder %s197, %s198
      %p212 = scmp.eq.s32.totalorder %s22, 1
      %p213 = por %p211, %p212
      %p215 = scmp.ne.s32.totalorder %s198, %s214
      %p216 = scmp.eq.s32.totalorder %s22, 0
      %p217 = por %p215, %p216
      %p218 = scmp.le.s32.totalorder 1, %s16
      %p219 = scmp.lt.s32.totalorder %s16, 3
      %p220 = pnand %p218, %p219
      %p221 = pneg %p220
      // Predicated region
      $region9: #{tpu_custom_call.1} parent=5 // pred_check
        _
      $region10: #{tpu_custom_call.1} parent=5 // pred_check_branch
        %223 = sbr.rel (%p220) target = $region12
      $region11: #{tpu_custom_call.1} parent=5 // pred_region
        %s224 = ssub.s32 %s16, 1
        // Predicated region
        $region13: #{tpu_custom_call.1} parent=11 // pred_check
          %p225 = pneg %p77
        $region14: #{tpu_custom_call.1} parent=11 // pred_check_branch
          %227 = sbr.rel (%p225) target = $region16
        $region15: #{tpu_custom_call.1} parent=11 // pred_region
          _
        $region16: #{tpu_custom_call.1} parent=11 // pred_fallthru
          _
        // Predicated region
        $region17: #{tpu_custom_call.1} parent=11 // pred_check
          %p228 = pneg %p98
        $region18: #{tpu_custom_call.1} parent=11 // pred_check_branch
          %230 = sbr.rel (%p228) target = $region20
        $region19: #{tpu_custom_call.1} parent=11 // pred_region
          _
        $region20: #{tpu_custom_call.1} parent=11 // pred_fallthru
          _
        // Predicated region
        $region21: #{tpu_custom_call.1} parent=11 // pred_check
          %p231 = pneg %p119
        $region22: #{tpu_custom_call.1} parent=11 // pred_check_branch
          %233 = sbr.rel (%p231) target = $region24
        $region23: #{tpu_custom_call.1} parent=11 // pred_region
          _
        $region24: #{tpu_custom_call.1} parent=11 // pred_fallthru
          _
        // Predicated region
        $region25: #{tpu_custom_call.1} parent=11 // pred_check
          %p234 = pneg %p140
        $region26: #{tpu_custom_call.1} parent=11 // pred_check_branch
          %236 = sbr.rel (%p234) target = $region28
        $region27: #{tpu_custom_call.1} parent=11 // pred_region
          _
        $region28: #{tpu_custom_call.1} parent=11 // pred_fallthru
          _
        // Predicated region
        $region29: #{tpu_custom_call.1} parent=11 // pred_check
          %p237 = pneg %p161
        $region30: #{tpu_custom_call.1} parent=11 // pred_check_branch
          %239 = sbr.rel (%p237) target = $region32
        $region31: #{tpu_custom_call.1} parent=11 // pred_region
          _
        $region32: #{tpu_custom_call.1} parent=11 // pred_fallthru
          _
        // Predicated region
        $region33: #{tpu_custom_call.1} parent=11 // pred_check
          %p240 = pneg %p182
        $region34: #{tpu_custom_call.1} parent=11 // pred_check_branch
          %242 = sbr.rel (%p240) target = $region36
        $region35: #{tpu_custom_call.1} parent=11 // pred_region
          _
        $region36: #{tpu_custom_call.1} parent=11 // pred_fallthru
          _
      $region12: #{tpu_custom_call.1} parent=5 // pred_fallthru
        _
      %p243 = scmp.lt.s32.totalorder %s16, 2
      // Predicated region
      $region37: #{tpu_custom_call.1} parent=5 // pred_check
        %p244 = pneg %p243
      $region38: #{tpu_custom_call.1} parent=5 // pred_check_branch
        %246 = sbr.rel (%p244) target = $region40
      $region39: #{tpu_custom_call.1} parent=5 // pred_region
        // Predicated region
        $region41: #{tpu_custom_call.1} parent=39 // pred_check
          %p247 = pneg %p50
        $region42: #{tpu_custom_call.1} parent=39 // pred_check_branch
          %249 = sbr.rel (%p247) target = $region44
        $region43: #{tpu_custom_call.1} parent=39 // pred_region
          %p250 = scmp.lt.s32.totalorder %s23, 1
          %s251 = scalar_select %p250, %s23, 1
          %p252 = scmp.lt.s32.totalorder %s24, 0
          %s253 = scalar_select %p252, %s24, 0
          %s254 = sadd.s32 %s253, %s251
          %s255 = smul.addr %s254, 2
          %s256 = scalar_lea.vmem %s0, %s255
        $region44: #{tpu_custom_call.1} parent=39 // pred_fallthru
          _
      $region40: #{tpu_custom_call.1} parent=5 // pred_fallthru
        _
      %p257 = scmp.le.s32.totalorder 1, %s16
      %p258 = scmp.lt.s32.totalorder %s16, 3
      %p259 = pnand %p257, %p258
      %p260 = pneg %p259
      // Predicated region
      $region45: #{tpu_custom_call.1} parent=5 // pred_check
        _
      $region46: #{tpu_custom_call.1} parent=5 // pred_check_branch
        %262 = sbr.rel (%p259) target = $region48
      $region47: #{tpu_custom_call.1} parent=5 // pred_region
        %s263 = ssub.s32 %s16, 1
        %p264 = scmp.lt.s32.totalorder %s25, 1
        %s265 = scalar_select %p264, %s25, 1
        %p266 = scmp.lt.s32.totalorder %s26, 0
        %s267 = scalar_select %p266, %s26, 0
        %s268 = sadd.s32 %s267, %s265
        %s269 = smul.addr %s268, 2
        %s270 = scalar_lea.vmem %s0, %s269
        %p271 = pneg %p56
        %p272 = pneg %p53
        %p273 = pneg %p77
        %p274 = pneg %p74
        %p275 = pneg %p98
        %p276 = pneg %p95
        %p277 = pneg %p119
        %p278 = pneg %p116
        %p279 = pneg %p140
        %p280 = pneg %p137
        %p281 = pneg %p161
        %p282 = pneg %p158
        %p283 = pneg %p182
        %p284 = pneg %p179
        %p285 = pneg %p210
        %p286 = pneg %p207
        %s287 = sand.u32 %s197, 1
        %s288 = scalar_lea.sflag [#allocation5], %s287
        %s289 = sand.u32 %s197, 1
        %s290 = smul.addr %s289, 4
        %s291 = scalar_lea.vmem [#allocation4], %s290
        %p292 = scmp.lt.s32.totalorder %s25, 1
        %s293 = scalar_select %p292, %s25, 1
        %p294 = scmp.lt.s32.totalorder %s26, 0
        %s295 = scalar_select %p294, %s26, 0
        %s296 = sadd.s32 %s295, %s293
        %s297 = smul.addr %s296, 2
        %s298 = scalar_lea.vmem %s0, %s297
        %p300 = scmp.eq.s32.totalorder %s26, 0
        // Predicated region
        $region49: #{tpu_custom_call.1} parent=47 // pred_check
          %p301 = pneg %p300
        $region50: #{tpu_custom_call.1} parent=47 // pred_check_branch
          %303 = sbr.rel (%p301) target = $region52
        $region51: #{tpu_custom_call.1} parent=47 // pred_region
          %vm304 = vcmask 25600
          %305 = vst.msk [vmem:[#allocation2] sm:$0x3] %vm304, 0
          %vm306 = vcmask 27648
          %307 = vst.msk [vmem:[#allocation3] sm:$0xf] %vm306, 0
        $region52: #{tpu_custom_call.1} parent=47 // pred_fallthru
          _
        %v308 = vld [vmem:[%s298] sm:$0x3]
        %310 = vrot.lane.b32.xlu0 %v308, 4
        %v311 = vpop.permute.xlu0 %310
        %vm313 = vcmask 156704
        %314 = vst.msk [vmem:[#allocation2] sm:$0x3] %vm313, %v311
        %s315 = scalar_lea.vmem %s1, 8
        %v316 = vld [vmem:[%s315] sm:$0xf]
        %v317 = vld [vmem:[%s1] sm:$0xf]
        %v318 = vld [vmem:[#allocation2] sm:$0x3]
        %vm319 = vcmask 31744
        %v321 = vsel %vm319, %v317, 0
        %vm323 = vcmask 1041408
        %v325 = vsel %vm323, %v318, 0
        %327 = vmatprep.subr.bf16.mxu0 0
        %328 = vmatpush1.bf16.msra.mxu0 %v325
        %329 = vmatprep.subr.bf16.mxu0 0
        %330 = vmatpush1.bf16.msra.mxu0 0
        %331 = vmatprep.subr.bf16.mxu0 0
        %332 = vmatpush1.bf16.msra.mxu0 0
        %333 = vmatprep.subr.bf16.mxu0 0
        %334 = vmatpush1.bf16.msra.mxu0 0
        %335 = vmatprep.subr.bf16.mxu0 0
        %336 = vmatpush1.bf16.msra.mxu0 0
        %337 = vmatprep.subr.bf16.mxu0 0
        %338 = vmatpush1.bf16.msra.mxu0 0
        %339 = vmatprep.subr.bf16.mxu0 0
        %340 = vmatpush1.bf16.msra.mxu0 0
        %341 = vmatprep.subr.bf16.mxu0 0
        %342 = vmatpush1.bf16.msra.mxu0 0
        %343 = vmatprep.subr.bf16.mxu0 0
        %344 = vmatpush1.bf16.msra.mxu0 0
        %345 = vmatprep.subr.bf16.mxu0 0
        %346 = vmatpush1.bf16.msra.mxu0 0
        %347 = vmatprep.subr.bf16.mxu0 0
        %348 = vmatpush1.bf16.msra.mxu0 0
        %349 = vmatprep.subr.bf16.mxu0 0
        %350 = vmatpush1.bf16.msra.mxu0 0
        %351 = vmatprep.subr.bf16.mxu0 0
        %352 = vmatpush1.bf16.msra.mxu0 0
        %353 = vmatprep.subr.bf16.mxu0 0
        %354 = vmatpush1.bf16.msra.mxu0 0
        %355 = vmatprep.subr.bf16.mxu0 0
        %356 = vmatpush1.bf16.msra.mxu0 0
        %357 = vmatprep.subr.bf16.mxu0 0
        %358 = vmatpush1.bf16.msra.mxu0 0
        %359 = vmatprep.mubr.bf16.mxu0 0
        %360 = vmatmul.mubr.bf16.gmra.mrb[0].mxu0 %v321
        %v361 = vpop.f32.mrb[0].mxu0
        %v362 = vadd.f32 0.0, %v361
        %v363 = vpop.f32.mrb[0].mxu0
        %v364 = vpop.f32.mrb[0].mxu0
        %v365 = vpop.f32.mrb[0].mxu0
        %366 = vdwg.mxu0
        %v368 = vsel %vm319, %v316, 0
        %v371 = vsel %vm323, %v308, 0
        %373 = vmatprep.subr.bf16.mxu0 0
        %374 = vmatpush1.bf16.msra.mxu0 %v371
        %375 = vmatprep.subr.bf16.mxu0 0
        %376 = vmatpush1.bf16.msra.mxu0 0
        %377 = vmatprep.subr.bf16.mxu0 0
        %378 = vmatpush1.bf16.msra.mxu0 0
        %379 = vmatprep.subr.bf16.mxu0 0
        %380 = vmatpush1.bf16.msra.mxu0 0
        %381 = vmatprep.subr.bf16.mxu0 0
        %382 = vmatpush1.bf16.msra.mxu0 0
        %383 = vmatprep.subr.bf16.mxu0 0
        %384 = vmatpush1.bf16.msra.mxu0 0
        %385 = vmatprep.subr.bf16.mxu0 0
        %386 = vmatpush1.bf16.msra.mxu0 0
        %387 = vmatprep.subr.bf16.mxu0 0
        %388 = vmatpush1.bf16.msra.mxu0 0
        %389 = vmatprep.subr.bf16.mxu0 0
        %390 = vmatpush1.bf16.msra.mxu0 0
        %391 = vmatprep.subr.bf16.mxu0 0
        %392 = vmatpush1.bf16.msra.mxu0 0
        %393 = vmatprep.subr.bf16.mxu0 0
        %394 = vmatpush1.bf16.msra.mxu0 0
        %395 = vmatprep.subr.bf16.mxu0 0
        %396 = vmatpush1.bf16.msra.mxu0 0
        %397 = vmatprep.subr.bf16.mxu0 0
        %398 = vmatpush1.bf16.msra.mxu0 0
        %399 = vmatprep.subr.bf16.mxu0 0
        %400 = vmatpush1.bf16.msra.mxu0 0
        %401 = vmatprep.subr.bf16.mxu0 0
        %402 = vmatpush1.bf16.msra.mxu0 0
        %403 = vmatprep.subr.bf16.mxu0 0
        %404 = vmatpush1.bf16.msra.mxu0 0
        %405 = vmatprep.mubr.bf16.mxu0 0
        %406 = vmatmul.mubr.bf16.gmra.mrb[0].mxu0 %v368
        %v407 = vpop.f32.mrb[0].mxu0
        %v408 = vadd.f32 %v362, %v407
        %v409 = vpop.f32.mrb[0].mxu0
        %v410 = vpop.f32.mrb[0].mxu0
        %v411 = vpop.f32.mrb[0].mxu0
        %412 = vdwg.mxu0
        %s413 = scalar_lea.vmem %s1, 4
        %v414 = vld [vmem:[%s413] sm:$0xf]
        %v417 = vunpack.c.l.s4 1983009808
        %v418 = vunpack.c.0.s8 %v417
        %v419 = vlaneseq
        %v420 = vshrl.u32 %v419, 7
        %v421 = vsub.s32 %v418, %v420
        %v422 = vrot.slane %v318, %v421
        %423 = vrot.lane.b32.xlu0 %v422, 126
        %v424 = vpop.permute.xlu0 %423
        %v426 = vsel %vm319, %v414, 0
        %v429 = vsel %vm323, %v424, 0
        %431 = vmatprep.subr.bf16.mxu0 0
        %432 = vmatpush1.bf16.msra.mxu0 %v429
        %433 = vmatprep.subr.bf16.mxu0 0
        %434 = vmatpush1.bf16.msra.mxu0 0
        %435 = vmatprep.subr.bf16.mxu0 0
        %436 = vmatpush1.bf16.msra.mxu0 0
        %437 = vmatprep.subr.bf16.mxu0 0
        %438 = vmatpush1.bf16.msra.mxu0 0
        %439 = vmatprep.subr.bf16.mxu0 0
        %440 = vmatpush1.bf16.msra.mxu0 0
        %441 = vmatprep.subr.bf16.mxu0 0
        %442 = vmatpush1.bf16.msra.mxu0 0
        %443 = vmatprep.subr.bf16.mxu0 0
        %444 = vmatpush1.bf16.msra.mxu0 0
        %445 = vmatprep.subr.bf16.mxu0 0
        %446 = vmatpush1.bf16.msra.mxu0 0
        %447 = vmatprep.subr.bf16.mxu0 0
        %448 = vmatpush1.bf16.msra.mxu0 0
        %449 = vmatprep.subr.bf16.mxu0 0
        %450 = vmatpush1.bf16.msra.mxu0 0
        %451 = vmatprep.subr.bf16.mxu0 0
        %452 = vmatpush1.bf16.msra.mxu0 0
        %453 = vmatprep.subr.bf16.mxu0 0
        %454 = vmatpush1.bf16.msra.mxu0 0
        %455 = vmatprep.subr.bf16.mxu0 0
        %456 = vmatpush1.bf16.msra.mxu0 0
        %457 = vmatprep.subr.bf16.mxu0 0
        %458 = vmatpush1.bf16.msra.mxu0 0
        %459 = vmatprep.subr.bf16.mxu0 0
        %460 = vmatpush1.bf16.msra.mxu0 0
        %461 = vmatprep.subr.bf16.mxu0 0
        %462 = vmatpush1.bf16.msra.mxu0 0
        %463 = vmatprep.mubr.bf16.mxu0 0
        %464 = vmatmul.mubr.bf16.gmra.mrb[0].mxu0 %v426
        %v465 = vpop.f32.mrb[0].mxu0
        %v466 = vadd.f32 0.0, %v465
        %v467 = vpop.f32.mrb[0].mxu0
        %v468 = vpop.f32.mrb[0].mxu0
        %v469 = vpop.f32.mrb[0].mxu0
        %470 = vdwg.mxu0
        %v471 = vadd.f32 %v408, %v466
        %v472 = vld [vmem:[%s2] sm:$0xff]
        %474 = vset.pattern.permute.xlu0 0
        %475 = vperm.xlu0 %474, %v472
        %v476 = vpop.permute.xlu0 %475
        %v478 = vadd.f32 %v471, %v476
        %v479 = vmax.f32 %v478, 0.0
        %v480 = vpack.c.bf16 %v479, %v479
        %v482 = vunpack.c.l.b16 %v480
        %v483 = vpack.c.b16 %v482, %v482
        %484 = vrot.lane.b32.xlu0 %v483, 4
        %v485 = vpop.permute.xlu0 %484
        %vm487 = vcmask 158752
        %488 = vst.msk [vmem:[#allocation3] sm:$0xf] %vm487, %v485
        %s489 = scalar_lea.vmem %s3, 8
        %v490 = vld [vmem:[%s489] sm:$0xf]
        %v491 = vld [vmem:[%s3] sm:$0xf]
        %v492 = vld [vmem:[#allocation3] sm:$0xf]
        %vm493 = vcmask 64512
        %v495 = vsel %vm493, %v491, 0
        %vm497 = vcmask 1043456
        %v499 = vsel %vm497, %v492, 0
        %501 = vmatprep.subr.bf16.mxu0 0
        %502 = vmatpush1.bf16.msra.mxu0 %v499
        %503 = vmatprep.subr.bf16.mxu0 0
        %504 = vmatpush1.bf16.msra.mxu0 0
        %505 = vmatprep.subr.bf16.mxu0 0
        %506 = vmatpush1.bf16.msra.mxu0 0
        %507 = vmatprep.subr.bf16.mxu0 0
        %508 = vmatpush1.bf16.msra.mxu0 0
        %509 = vmatprep.subr.bf16.mxu0 0
        %510 = vmatpush1.bf16.msra.mxu0 0
        %511 = vmatprep.subr.bf16.mxu0 0
        %512 = vmatpush1.bf16.msra.mxu0 0
        %513 = vmatprep.subr.bf16.mxu0 0
        %514 = vmatpush1.bf16.msra.mxu0 0
        %515 = vmatprep.subr.bf16.mxu0 0
        %516 = vmatpush1.bf16.msra.mxu0 0
        %517 = vmatprep.subr.bf16.mxu0 0
        %518 = vmatpush1.bf16.msra.mxu0 0
        %519 = vmatprep.subr.bf16.mxu0 0
        %520 = vmatpush1.bf16.msra.mxu0 0
        %521 = vmatprep.subr.bf16.mxu0 0
        %522 = vmatpush1.bf16.msra.mxu0 0
        %523 = vmatprep.subr.bf16.mxu0 0
        %524 = vmatpush1.bf16.msra.mxu0 0
        %525 = vmatprep.subr.bf16.mxu0 0
        %526 = vmatpush1.bf16.msra.mxu0 0
        %527 = vmatprep.subr.bf16.mxu0 0
        %528 = vmatpush1.bf16.msra.mxu0 0
        %529 = vmatprep.subr.bf16.mxu0 0
        %530 = vmatpush1.bf16.msra.mxu0 0
        %531 = vmatprep.subr.bf16.mxu0 0
        %532 = vmatpush1.bf16.msra.mxu0 0
        %533 = vmatprep.mubr.bf16.mxu0 0
        %534 = vmatmul.mubr.bf16.gmra.mrb[0].mxu0 %v495
        %v535 = vpop.f32.mrb[0].mxu0
        %v536 = vadd.f32 0.0, %v535
        %v537 = vpop.f32.mrb[0].mxu0
        %v538 = vpop.f32.mrb[0].mxu0
        %v539 = vpop.f32.mrb[0].mxu0
        %540 = vdwg.mxu0
        %v542 = vsel %vm493, %v490, 0
        %v545 = vsel %vm497, %v480, 0
        %547 = vmatprep.subr.bf16.mxu0 0
        %548 = vmatpush1.bf16.msra.mxu0 %v545
        %549 = vmatprep.subr.bf16.mxu0 0
        %550 = vmatpush1.bf16.msra.mxu0 0
        %551 = vmatprep.subr.bf16.mxu0 0
        %552 = vmatpush1.bf16.msra.mxu0 0
        %553 = vmatprep.subr.bf16.mxu0 0
        %554 = vmatpush1.bf16.msra.mxu0 0
        %555 = vmatprep.subr.bf16.mxu0 0
        %556 = vmatpush1.bf16.msra.mxu0 0
        %557 = vmatprep.subr.bf16.mxu0 0
        %558 = vmatpush1.bf16.msra.mxu0 0
        %559 = vmatprep.subr.bf16.mxu0 0
        %560 = vmatpush1.bf16.msra.mxu0 0
        %561 = vmatprep.subr.bf16.mxu0 0
        %562 = vmatpush1.bf16.msra.mxu0 0
        %563 = vmatprep.subr.bf16.mxu0 0
        %564 = vmatpush1.bf16.msra.mxu0 0
        %565 = vmatprep.subr.bf16.mxu0 0
        %566 = vmatpush1.bf16.msra.mxu0 0
        %567 = vmatprep.subr.bf16.mxu0 0
        %568 = vmatpush1.bf16.msra.mxu0 0
        %569 = vmatprep.subr.bf16.mxu0 0
        %570 = vmatpush1.bf16.msra.mxu0 0
        %571 = vmatprep.subr.bf16.mxu0 0
        %572 = vmatpush1.bf16.msra.mxu0 0
        %573 = vmatprep.subr.bf16.mxu0 0
        %574 = vmatpush1.bf16.msra.mxu0 0
        %575 = vmatprep.subr.bf16.mxu0 0
        %576 = vmatpush1.bf16.msra.mxu0 0
        %577 = vmatprep.subr.bf16.mxu0 0
        %578 = vmatpush1.bf16.msra.mxu0 0
        %579 = vmatprep.mubr.bf16.mxu0 0
        %580 = vmatmul.mubr.bf16.gmra.mrb[0].mxu0 %v542
        %v581 = vpop.f32.mrb[0].mxu0
        %v582 = vadd.f32 %v536, %v581
        %v583 = vpop.f32.mrb[0].mxu0
        %v584 = vpop.f32.mrb[0].mxu0
        %v585 = vpop.f32.mrb[0].mxu0
        %586 = vdwg.mxu0
        %s587 = scalar_lea.vmem %s3, 4
        %v588 = vld [vmem:[%s587] sm:$0xf]
        %v590 = vunpack.c.l.b16 %v492
        %v591 = vpack.c.b16 %v590, %v590
        %592 = vrot.lane.b32.xlu0 %v591, 126
        %v593 = vpop.permute.xlu0 %592
        %v595 = vsel %vm493, %v588, 0
        %v598 = vsel %vm497, %v593, 0
        %600 = vmatprep.subr.bf16.mxu0 0
        %601 = vmatpush1.bf16.msra.mxu0 %v598
        %602 = vmatprep.subr.bf16.mxu0 0
        %603 = vmatpush1.bf16.msra.mxu0 0
        %604 = vmatprep.subr.bf16.mxu0 0
        %605 = vmatpush1.bf16.msra.mxu0 0
        %606 = vmatprep.subr.bf16.mxu0 0
        %607 = vmatpush1.bf16.msra.mxu0 0
        %608 = vmatprep.subr.bf16.mxu0 0
        %609 = vmatpush1.bf16.msra.mxu0 0
        %610 = vmatprep.subr.bf16.mxu0 0
        %611 = vmatpush1.bf16.msra.mxu0 0
        %612 = vmatprep.subr.bf16.mxu0 0
        %613 = vmatpush1.bf16.msra.mxu0 0
        %614 = vmatprep.subr.bf16.mxu0 0
        %615 = vmatpush1.bf16.msra.mxu0 0
        %616 = vmatprep.subr.bf16.mxu0 0
        %617 = vmatpush1.bf16.msra.mxu0 0
        %618 = vmatprep.subr.bf16.mxu0 0
        %619 = vmatpush1.bf16.msra.mxu0 0
        %620 = vmatprep.subr.bf16.mxu0 0
        %621 = vmatpush1.bf16.msra.mxu0 0
        %622 = vmatprep.subr.bf16.mxu0 0
        %623 = vmatpush1.bf16.msra.mxu0 0
        %624 = vmatprep.subr.bf16.mxu0 0
        %625 = vmatpush1.bf16.msra.mxu0 0
        %626 = vmatprep.subr.bf16.mxu0 0
        %627 = vmatpush1.bf16.msra.mxu0 0
        %628 = vmatprep.subr.bf16.mxu0 0
        %629 = vmatpush1.bf16.msra.mxu0 0
        %630 = vmatprep.subr.bf16.mxu0 0
        %631 = vmatpush1.bf16.msra.mxu0 0
        %632 = vmatprep.mubr.bf16.mxu0 0
        %633 = vmatmul.mubr.bf16.gmra.mrb[0].mxu0 %v595
        %v634 = vpop.f32.mrb[0].mxu0
        %v635 = vadd.f32 0.0, %v634
        %v636 = vpop.f32.mrb[0].mxu0
        %v637 = vpop.f32.mrb[0].mxu0
        %v638 = vpop.f32.mrb[0].mxu0
        %639 = vdwg.mxu0
        %v640 = vadd.f32 %v582, %v635
        %v641 = vld [vmem:[%s4] sm:$0xff]
        %643 = vset.pattern.permute.xlu0 0
        %644 = vperm.xlu0 %643, %v641
        %v645 = vpop.permute.xlu0 %644
        %v647 = vadd.f32 %v640, %v645
        %v648 = vmax.f32 %v647, 0.0
        %v649 = vld [vmem:[%s5] sm:$0xf]
        %v650 = vld [vmem:[%s6] sm:$0xff]
        %652 = vset.pattern.permute.xlu0 0
        %653 = vperm.xlu0 %652, %v650
        %v654 = vpop.permute.xlu0 %653
        %v657 = vsel %vm319, %v649, 0
        %659 = vmatprep.subr.bf16.mxu0 0
        %660 = vmatpush1.bf16.msra.mxu0 %v371
        %661 = vmatprep.subr.bf16.mxu0 0
        %662 = vmatpush1.bf16.msra.mxu0 0
        %663 = vmatprep.subr.bf16.mxu0 0
        %664 = vmatpush1.bf16.msra.mxu0 0
        %665 = vmatprep.subr.bf16.mxu0 0
        %666 = vmatpush1.bf16.msra.mxu0 0
        %667 = vmatprep.subr.bf16.mxu0 0
        %668 = vmatpush1.bf16.msra.mxu0 0
        %669 = vmatprep.subr.bf16.mxu0 0
        %670 = vmatpush1.bf16.msra.mxu0 0
        %671 = vmatprep.subr.bf16.mxu0 0
        %672 = vmatpush1.bf16.msra.mxu0 0
        %673 = vmatprep.subr.bf16.mxu0 0
        %674 = vmatpush1.bf16.msra.mxu0 0
        %675 = vmatprep.subr.bf16.mxu0 0
        %676 = vmatpush1.bf16.msra.mxu0 0
        %677 = vmatprep.subr.bf16.mxu0 0
        %678 = vmatpush1.bf16.msra.mxu0 0
        %679 = vmatprep.subr.bf16.mxu0 0
        %680 = vmatpush1.bf16.msra.mxu0 0
        %681 = vmatprep.subr.bf16.mxu0 0
        %682 = vmatpush1.bf16.msra.mxu0 0
        %683 = vmatprep.subr.bf16.mxu0 0
        %684 = vmatpush1.bf16.msra.mxu0 0
        %685 = vmatprep.subr.bf16.mxu0 0
        %686 = vmatpush1.bf16.msra.mxu0 0
        %687 = vmatprep.subr.bf16.mxu0 0
        %688 = vmatpush1.bf16.msra.mxu0 0
        %689 = vmatprep.subr.bf16.mxu0 0
        %690 = vmatpush1.bf16.msra.mxu0 0
        %691 = vmatprep.mubr.bf16.mxu0 0
        %692 = vmatmul.mubr.bf16.gmra.mrb[0].mxu0 %v657
        %v693 = vpop.f32.mrb[0].mxu0
        %v694 = vadd.f32 %v654, %v693
        %v695 = vpop.f32.mrb[0].mxu0
        %v696 = vpop.f32.mrb[0].mxu0
        %v697 = vpop.f32.mrb[0].mxu0
        %698 = vdwg.mxu0
        %v699 = vadd.f32 %v648, %v694
        %v700 = vmax.f32 %v699, 0.0
        %v701 = vpack.c.bf16 %v700, %v700
        %vm702 = vcmask 125952
        %703 = vst.msk [vmem:[%s291] sm:$0xf] %vm702, %v701
        %s704 = sand.u32 %s197, 1
        %s705 = scalar_lea.sflag [#allocation5], %s704
        %s706 = sand.u32 %s197, 1
        %s707 = smul.addr %s706, 4
        %s708 = scalar_lea.vmem [#allocation4], %s707
        // Predicated region
        $region53: #{tpu_custom_call.1} parent=47 // pred_check
          %p709 = pneg %p207
        $region54: #{tpu_custom_call.1} parent=47 // pred_check_branch
          %711 = sbr.rel (%p709) target = $region56
        $region55: #{tpu_custom_call.1} parent=47 // pred_region
          %s713 = ssub.s32 64, 64
          %714 = vsyncadd %s705, %s713
          %s715 = sadd.s32 %s26, %s25
          %s716 = smul.addr %s715, 64
          %s717 = scalar_lea.hbm %s7, %s716
          %s719 = sshll.u32 %s708, 4
          %s720 = int_to_ptr.vmem [resolvable:$true] %s719
          %722 = dma.vmem_to_hbm [thread:$0]  %s720, 64, %s717, %s705
        $region56: #{tpu_custom_call.1} parent=47 // pred_fallthru
          _
      $region48: #{tpu_custom_call.1} parent=5 // pred_fallthru
        _
      %p723 = scmp.le.s32.totalorder 2, %s16
      // Predicated region
      $region57: #{tpu_custom_call.1} parent=5 // pred_check
        %p724 = pneg %p723
      $region58: #{tpu_custom_call.1} parent=5 // pred_check_branch
        %726 = sbr.rel (%p724) target = $region60
      $region59: #{tpu_custom_call.1} parent=5 // pred_region
        %s727 = ssub.s32 %s16, 2
        // Predicated region
        $region61: #{tpu_custom_call.1} parent=59 // pred_check
          %p728 = pneg %p213
        $region62: #{tpu_custom_call.1} parent=59 // pred_check_branch
          %730 = sbr.rel (%p728) target = $region64
        $region63: #{tpu_custom_call.1} parent=59 // pred_region
          %s731 = sand.u32 %s198, 1
          %s732 = scalar_lea.sflag [#allocation5], %s731
          %s733 = sand.u32 %s198, 1
          %s734 = smul.addr %s733, 4
          %s735 = scalar_lea.vmem [#allocation4], %s734
          %736 = dma.done %s732, 64
        $region64: #{tpu_custom_call.1} parent=59 // pred_fallthru
          _
      $region60: #{tpu_custom_call.1} parent=5 // pred_fallthru
        _
    $region6: #{tpu_custom_call.1} parent=1 // loop_footer
      %s20 = sadd.s32 1, %s16
    $region7: #{tpu_custom_call.1} parent=1 // loop_footer_branch
      %15 = sbr.rel target = $region3
    $region8: #{tpu_custom_call.1} parent=1 // loop_exit
      _
    %737 = vsyncpa [#allocation5], 1
    %s738 = scalar_lea.sflag [#allocation5], 1
    %739 = vsyncpa %s738, 1

</llo_original>
